<compile_context>
chip_gen: v5e
topology: v5e:2x2
jax: 0.10.0
libtpu: 0.0.40
codegen_flags: <defaults>
</compile_context>

<pallas_src>
import jax
import jax.numpy as jnp
from jax.experimental import pallas as pl
from jax.experimental.pallas import tpu as pltpu


def _spatial_attention_kernel(x_ref, m_ref, o_ref, sum_ref, max_ref):
    # x_ref:   (1, c_tile, HW)  channel tile of the input (lane-dense spatial)
    # m_ref:   (2, HW, HW)      dense conv matrices [Ma (incl. 1/C), Mb]
    # o_ref:   (1, 1, HW)       sigmoid(conv(...)) for this batch element
    # sum_ref, max_ref: (1, HW) f32  running channel-sum / channel-max
    k = pl.program_id(1)
    nk = pl.num_programs(1)

    xb = x_ref[0]                                                  # (c_tile, HW)
    tile_sum = jnp.sum(xb.astype(jnp.float32), axis=0, keepdims=True)   # (1, HW)
    tile_max = jnp.max(xb, axis=0, keepdims=True).astype(jnp.float32)   # (1, HW)

    @pl.when(k == 0)
    def _():
        sum_ref[...] = tile_sum
        max_ref[...] = tile_max

    @pl.when(k > 0)
    def _():
        sum_ref[...] = sum_ref[...] + tile_sum
        max_ref[...] = jnp.maximum(max_ref[...], tile_max)

    @pl.when(k == nk - 1)
    def _():
        # 1/C is folded into m_ref[0]; sum_ref is used directly.
        z = (jnp.dot(sum_ref[...], m_ref[0],
                     preferred_element_type=jnp.float32) +
             jnp.dot(max_ref[...], m_ref[1],
                     preferred_element_type=jnp.float32))          # (1, HW)
        o_ref[0] = jax.nn.sigmoid(z).astype(o_ref.dtype)


def _build_conv_matrix(w, H, W, inv_c):
    """(1, 2, K, K) conv weight -> (2, H*W, H*W) dense SAME-conv matrices.

    out_flat[p] = sum_q avg_sum_flat[q] * M[0, q, p] + max_flat[q] * M[1, q, p],
    with 1/C folded into M[0] so the kernel can feed the raw channel sum.
    """
    K = w.shape[-1]
    pad = K // 2
    wf = w.reshape(2, K, K).astype(jnp.float32)

    rows = jnp.arange(H)
    cols = jnp.arange(W)
    di = rows[:, None] - rows[None, :] + pad          # (H, H), [i_src, i_dst]
    dj = cols[:, None] - cols[None, :] + pad          # (W, W), [j_src, j_dst]
    vi = (di >= 0) & (di < K)
    vj = (dj >= 0) & (dj < K)
    di_c = jnp.clip(di, 0, K - 1)
    dj_c = jnp.clip(dj, 0, K - 1)

    # m[c, i', j', i, j] = w[c, i'-i+pad, j'-j+pad] inside the kernel footprint.
    m = wf[:, di_c[:, None, :, None], dj_c[None, :, None, :]]      # (2,H,W,H,W)
    valid = (vi[:, None, :, None] & vj[None, :, None, :]).astype(jnp.float32)
    m = m * valid[None]
    m = m.reshape(2, H * W, H * W)
    m = m.at[0].multiply(inv_c)                       # fold 1/C into the avg half
    return m


def _vmem_budgets():
    """(per-input-buffer budget, vmem_limit_bytes) tuned per chip generation."""
    try:
        vmem = pltpu.get_tpu_info().vmem_capacity_bytes
    except Exception:  # no TPU info available (e.g. interpret mode)
        vmem = 64 * 1024 * 1024
    if vmem >= 100 * 1024 * 1024:          # v5e / v6e: 128 MiB VMEM
        return 16 * 1024 * 1024, 64 * 1024 * 1024
    else:                                  # v7x: 64 MiB VMEM per TensorCore
        return 8 * 1024 * 1024, 40 * 1024 * 1024


def _pick_c_tile(C, HW, itemsize, budget_bytes):
    """Largest divisor of C (multiple of 8, or C itself) whose slab fits budget."""
    candidates = [ct for ct in range(1, C + 1)
                  if C % ct == 0 and (ct % 8 == 0 or ct == C)]
    fitting = [ct for ct in candidates if ct * HW * itemsize <= budget_bytes]
    if fitting:
        return max(fitting)
    return min(candidates)


def spatial_attention(x, w, *, c_tile=None):
    """x: (N, C, H, W); w: (1, 2, K, K) PyTorch Conv2d(2,1,K,pad=K//2) weight.

    Returns sigmoid(conv(cat([mean_C(x), max_C(x)]))) of shape (N, 1, H, W).
    """
    N, C, H, W = x.shape
    K = w.shape[-1]
    assert w.shape == (1, 2, K, K)
    HW = H * W
    # Dense conv-matrix path is only sensible for moderate feature maps.
    assert 2 * HW * HW * 4 <= 8 * 1024 * 1024, "feature map too large for dense conv matrix"

    budget_bytes, vmem_limit = _vmem_budgets()
    if c_tile is None:
        c_tile = _pick_c_tile(C, HW, x.dtype.itemsize, budget_bytes)
    assert C % c_tile == 0, (C, c_tile)
    nk = C // c_tile

    conv_mat = _build_conv_matrix(w, H, W, 1.0 / C)    # (2, HW, HW)
    x_flat = x.reshape(N, C, HW)                       # lane-dense spatial axis

    out = pl.pallas_call(
        _spatial_attention_kernel,
        out_shape=jax.ShapeDtypeStruct((N, 1, HW), x.dtype),
        grid_spec=pltpu.PrefetchScalarGridSpec(
            num_scalar_prefetch=0,
            grid=(N, nk),
            in_specs=[
                pl.BlockSpec((1, c_tile, HW), lambda n, k: (n, k, 0)),
                pl.BlockSpec((2, HW, HW), lambda n, k: (0, 0, 0)),
            ],
            out_specs=pl.BlockSpec((1, 1, HW), lambda n, k: (n, 0, 0)),
            scratch_shapes=[
                pltpu.VMEM((1, HW), jnp.float32),   # running channel sum
                pltpu.VMEM((1, HW), jnp.float32),   # running channel max
            ],
        ),
        compiler_params=pltpu.CompilerParams(
            dimension_semantics=("parallel", "arbitrary"),
            vmem_limit_bytes=vmem_limit,
        ),
    )(x_flat, conv_mat)
    return out.reshape(N, 1, H, W)


def spatial_attention_ref(x, w):
    """Pure-JAX reference mirroring the PyTorch forward."""
    avg = jnp.mean(x, axis=1, keepdims=True)
    mx = jnp.max(x, axis=1, keepdims=True)
    xc = jnp.concatenate([avg, mx], axis=1)            # (N, 2, H, W)
    out = jax.lax.conv_general_dilated(
        xc, w, window_strides=(1, 1), padding="SAME",
        dimension_numbers=("NCHW", "OIHW", "NCHW"),
        precision=jax.lax.Precision.HIGHEST)
    return jax.nn.sigmoid(out)                         # (N, 1, H, W)


if __name__ == "__main__":
    N, C, H, W = 2, 32, 16, 16
    K = 7

    key = jax.random.PRNGKey(0)
    kx, kw = jax.random.split(key)
    x = jax.random.normal(kx, (N, C, H, W), dtype=jnp.float32)
    # Conv2d(2, 1, 7, padding=3, bias=False) weight: (1, 2, 7, 7).
    w = jax.random.normal(kw, (1, 2, K, K), dtype=jnp.float32) * (1.0 / (2 * K * K) ** 0.5)

    # c_tile=8 forces a multi-step channel reduction (exercises the
    # init / accumulate / finalize paths); production use can leave it None.
    out = spatial_attention(x, w, c_tile=8)
    out = jax.block_until_ready(out)

    ref = spatial_attention_ref(x, w)
    assert out.shape == (N, 1, H, W)
    err = float(jnp.max(jnp.abs(out - ref)))
    assert err < 1e-4, f"max abs error {err}"

    print("KERNEL_OK")
</pallas_src>

<mosaic_0001>
module attributes {stable_mosaic.version = 11 : i64} {
  func.func @_spatial_attention_kernel(%arg0: i32, %arg1: i32, %arg2: memref<1x8x256xf32, #tpu.memory_space<vmem>>, %arg3: memref<2x256x256xf32, #tpu.memory_space<vmem>>, %arg4: memref<1x1x256xf32, #tpu.memory_space<vmem>>, %arg5: memref<1x256xf32, #tpu.memory_space<vmem>>, %arg6: memref<1x256xf32, #tpu.memory_space<vmem>>) attributes {dimension_semantics = [#tpu.dimension_semantics<parallel>, #tpu.dimension_semantics<arbitrary>], iteration_bounds = array<i64: 2, 4>, scalar_prefetch = 0 : i64, scratch_operands = 2 : i64, tpu.core_type = #tpu.core_type<tc>, window_params = [{transform_indices = @transform_0, window_bounds = array<i64: 1, 8, 256>}, {pipeline_mode = #tpu.pipeline_mode<synchronous>, transform_indices = @transform_1, window_bounds = array<i64: 2, 256, 256>}, {transform_indices = @transform_2, window_bounds = array<i64: 1, 1, 256>}]} {
    %c0 = arith.constant 0 : index
    %c0_0 = arith.constant 0 : index
    %c0_1 = arith.constant 0 : index
    %0 = vector.load %arg2[%c0, %c0_0, %c0_1] : memref<1x8x256xf32, #tpu.memory_space<vmem>>, vector<1x8x256xf32>
    %1 = vector.shape_cast %0 : vector<1x8x256xf32> to vector<8x256xf32>
    %cst = arith.constant dense<0.000000e+00> : vector<256xf32>
    %2 = vector.multi_reduction <add>, %1, %cst [0] : vector<8x256xf32> to vector<256xf32>
    %3 = vector.shape_cast %2 : vector<256xf32> to vector<1x256xf32>
    %cst_2 = arith.constant dense<0xFF800000> : vector<256xf32>
    %4 = vector.multi_reduction <maximumf>, %1, %cst_2 [0] : vector<8x256xf32> to vector<256xf32>
    %5 = vector.shape_cast %4 : vector<256xf32> to vector<1x256xf32>
    %c0_i32 = arith.constant 0 : i32
    %6 = arith.cmpi eq, %arg1, %c0_i32 : i32
    %7 = arith.extui %6 : i1 to i32
    %c0_i32_3 = arith.constant 0 : i32
    %8 = arith.cmpi ne, %7, %c0_i32_3 : i32
    scf.if %8 {
      %c0_7 = arith.constant 0 : index
      %c0_8 = arith.constant 0 : index
      %15 = vector.load %arg5[%c0_7, %c0_8] : memref<1x256xf32, #tpu.memory_space<vmem>>, vector<1x256xf32>
      tpu.vector_store %arg5[%c0_7, %c0_8], %3 {strides = array<i32>} : memref<1x256xf32, #tpu.memory_space<vmem>>, vector<1x256xf32>,
      %c0_9 = arith.constant 0 : index
      %c0_10 = arith.constant 0 : index
      %16 = vector.load %arg6[%c0_9, %c0_10] : memref<1x256xf32, #tpu.memory_space<vmem>>, vector<1x256xf32>
      tpu.vector_store %arg6[%c0_9, %c0_10], %5 {strides = array<i32>} : memref<1x256xf32, #tpu.memory_space<vmem>>, vector<1x256xf32>,
    } else {
    }
    %c0_i32_4 = arith.constant 0 : i32
    %9 = arith.cmpi sgt, %arg1, %c0_i32_4 : i32
    %10 = arith.extui %9 : i1 to i32
    %c0_i32_5 = arith.constant 0 : i32
    %11 = arith.cmpi ne, %10, %c0_i32_5 : i32
    scf.if %11 {
      %c0_7 = arith.constant 0 : index
      %c0_8 = arith.constant 0 : index
      %15 = vector.load %arg5[%c0_7, %c0_8] : memref<1x256xf32, #tpu.memory_space<vmem>>, vector<1x256xf32>
      %16 = arith.addf %15, %3 : vector<1x256xf32>
      %c0_9 = arith.constant 0 : index
      %c0_10 = arith.constant 0 : index
      %17 = vector.load %arg5[%c0_9, %c0_10] : memref<1x256xf32, #tpu.memory_space<vmem>>, vector<1x256xf32>
      tpu.vector_store %arg5[%c0_9, %c0_10], %16 {strides = array<i32>} : memref<1x256xf32, #tpu.memory_space<vmem>>, vector<1x256xf32>,
      %c0_11 = arith.constant 0 : index
      %c0_12 = arith.constant 0 : index
      %18 = vector.load %arg6[%c0_11, %c0_12] : memref<1x256xf32, #tpu.memory_space<vmem>>, vector<1x256xf32>
      %19 = arith.maximumf %18, %5 : vector<1x256xf32>
      %c0_13 = arith.constant 0 : index
      %c0_14 = arith.constant 0 : index
      %20 = vector.load %arg6[%c0_13, %c0_14] : memref<1x256xf32, #tpu.memory_space<vmem>>, vector<1x256xf32>
      tpu.vector_store %arg6[%c0_13, %c0_14], %19 {strides = array<i32>} : memref<1x256xf32, #tpu.memory_space<vmem>>, vector<1x256xf32>,
    } else {
    }
    %c3_i32 = arith.constant 3 : i32
    %12 = arith.cmpi eq, %arg1, %c3_i32 : i32
    %13 = arith.extui %12 : i1 to i32
    %c0_i32_6 = arith.constant 0 : i32
    %14 = arith.cmpi ne, %13, %c0_i32_6 : i32
    scf.if %14 {
      %c0_7 = arith.constant 0 : index
      %c0_8 = arith.constant 0 : index
      %15 = vector.load %arg5[%c0_7, %c0_8] : memref<1x256xf32, #tpu.memory_space<vmem>>, vector<1x256xf32>
      %c0_9 = arith.constant 0 : index
      %c0_10 = arith.constant 0 : index
      %c0_11 = arith.constant 0 : index
      %16 = vector.load %arg3[%c0_9, %c0_10, %c0_11] : memref<2x256x256xf32, #tpu.memory_space<vmem>>, vector<1x256x256xf32>
      %17 = vector.shape_cast %16 : vector<1x256x256xf32> to vector<256x256xf32>
      %cst_12 = arith.constant dense<0.000000e+00> : vector<1x256xf32>
      %18 = tpu.matmul %15, %17, %cst_12 {dimension_numbers = #tpu.dot_dimension_numbers<[1], [0], [0], [1], [0, 0, 1, 1], [], []>} : vector<1x256xf32>, vector<256x256xf32>, vector<1x256xf32> -> vector<1x256xf32>
      %c0_13 = arith.constant 0 : index
      %c0_14 = arith.constant 0 : index
      %19 = vector.load %arg6[%c0_13, %c0_14] : memref<1x256xf32, #tpu.memory_space<vmem>>, vector<1x256xf32>
      %c1 = arith.constant 1 : index
      %c0_15 = arith.constant 0 : index
      %c0_16 = arith.constant 0 : index
      %20 = vector.load %arg3[%c1, %c0_15, %c0_16] : memref<2x256x256xf32, #tpu.memory_space<vmem>>, vector<1x256x256xf32>
      %21 = vector.shape_cast %20 : vector<1x256x256xf32> to vector<256x256xf32>
      %cst_17 = arith.constant dense<0.000000e+00> : vector<1x256xf32>
      %22 = tpu.matmul %19, %21, %cst_17 {dimension_numbers = #tpu.dot_dimension_numbers<[1], [0], [0], [1], [0, 0, 1, 1], [], []>} : vector<1x256xf32>, vector<256x256xf32>, vector<1x256xf32> -> vector<1x256xf32>
      %23 = arith.addf %18, %22 : vector<1x256xf32>
      %24 = arith.negf %23 : vector<1x256xf32>
      %25 = math.exp %24 : vector<1x256xf32>
      %cst_18 = arith.constant 1.000000e+00 : f32
      %26 = vector.broadcast %cst_18 : f32 to vector<1x256xf32>
      %27 = arith.addf %26, %25 : vector<1x256xf32>
      %28 = arith.divf %26, %27 : vector<1x256xf32>
      %c0_19 = arith.constant 0 : index
      %c0_20 = arith.constant 0 : index
      %c0_21 = arith.constant 0 : index
      %29 = vector.load %arg4[%c0_19, %c0_20, %c0_21] : memref<1x1x256xf32, #tpu.memory_space<vmem>>, vector<1x1x256xf32>
      %30 = vector.shape_cast %29 : vector<1x1x256xf32> to vector<1x256xf32>
      %31 = vector.shape_cast %28 : vector<1x256xf32> to vector<1x1x256xf32>
      tpu.vector_store %arg4[%c0_19, %c0_20, %c0_21], %31 {strides = array<i32>} : memref<1x1x256xf32, #tpu.memory_space<vmem>>, vector<1x1x256xf32>,
    } else {
    }
    return
  }
  func.func @transform_0(%arg0: i32, %arg1: i32) -> (i32, i32, i32) {
    %c0_i32 = arith.constant 0 : i32
    %c0_i32_0 = arith.constant 0 : i32
    return %arg0, %arg1, %c0_i32 : i32, i32, i32
  }
  func.func @transform_1(%arg0: i32, %arg1: i32) -> (i32, i32, i32) {
    %c0_i32 = arith.constant 0 : i32
    %c0_i32_0 = arith.constant 0 : i32
    %c0_i32_1 = arith.constant 0 : i32
    %c0_i32_2 = arith.constant 0 : i32
    return %c0_i32, %c0_i32_0, %c0_i32_1 : i32, i32, i32
  }
  func.func @transform_2(%arg0: i32, %arg1: i32) -> (i32, i32, i32) {
    %c0_i32 = arith.constant 0 : i32
    %c0_i32_0 = arith.constant 0 : i32
    %c0_i32_1 = arith.constant 0 : i32
    return %arg0, %c0_i32, %c0_i32_0 : i32, i32, i32
  }
}

</mosaic_0001>

<llo_original>
// kernel: tpu_custom_call.1
$region0: #{tpu_custom_call.1}
  #allocation0 [shape = 'u32[]', space=smem, size = 0x4, offset = 0x4, fixed_abs, tag = 'smem constant byte address 0x4 - core index']
  #allocation1 [shape = 'u32[72,128]{1,0:T(1,128)}', space=vmem, size = 0x9000, scoped, tag = 'internal scratch']
  #allocation2 [shape = 'f32[1,256]{1,0:T(1,128)}', space=vmem, size = 0x400, scoped, tag = 'scratch operand']
  #allocation3 [shape = 'f32[1,256]{1,0:T(1,128)}', space=vmem, size = 0x400, scoped, tag = 'scratch operand']
  %s0 = inlined_call_operand.hbm [shape: f32[2,32,256], index: 0, kind: input, shape index: {}]
  %s1 = inlined_call_operand.hbm [shape: f32[2,256,256], index: 1, kind: input, shape index: {}]
  %s2 = inlined_call_operand.hbm [shape: f32[2,1,256], index: 2, kind: output, shape index: {}]
  %s3 = sld [smem:[#allocation0]]
  $region61: #{tpu_custom_call.1} parent=0
    _
  %s5 = ssub.s32 1, %s3
  %s6 = scalar_select 0, %s5, %s3
  $region1: #{tpu_custom_call.1} parent=0
    #allocation4 [shape = 'u8[16384]{0}', space=vmem, size = 0x4000, scoped, tag = 'input window, operand 0']
    #allocation5 [shape = 's32[2]{0}', space=sflag, size = 0x8, scoped, tag = 'scoped memory for tpu_custom_call.1']
    #allocation6 [shape = 's32[2]{0}', space=sflag, size = 0x8, scoped, tag = 'scoped memory for tpu_custom_call.1']
    #allocation7 [shape = 'u8[524288]{0}', space=vmem, size = 0x80000, scoped, tag = 'input window, operand 1, single buffered']
    #allocation8 [shape = 's32[1]{0}', space=sflag, size = 0x4, scoped, tag = 'scoped memory for tpu_custom_call.1']
    #allocation9 [shape = 'u8[2048]{0}', space=vmem, size = 0x800, scoped, tag = 'output window, operand 0']
    %7 = vsyncpa [#allocation5], 0
    %s8 = scalar_lea.sflag [#allocation5], 1
    %9 = vsyncpa %s8, 0
    %10 = vsyncpa [#allocation8], 0
    %11 = vsyncpa [#allocation6], 0
    %s12 = scalar_lea.sflag [#allocation6], 1
    %13 = vsyncpa %s12, 0
    loop: start=0, step=1, limit=10
    $region2: #{tpu_custom_call.1} parent=1 // loop_pre_header
      _
    $region3: #{tpu_custom_call.1} parent=1 // loop_header
      %s15 = sphi 0, %s19
      %p16 = scmp.ge.s32.totalorder %s15, 10
      %s22 = sphi 0, %s34
      %s23 = sphi 0, %s30
      %s24 = sphi 0, %s22
      %s25 = sphi 0, %s23
      %s26 = sphi 0, %s24
      %s27 = sphi 0, %s25
      %s39 = sphi 0, %s41
      %s42 = sphi 0, %s39
      %s43 = sphi 0, %s42
      %s59 = sphi 0, %s43
      %s63 = sphi 0, %s63
      %s65 = sphi 0, %s63
      %s66 = sphi 0, %s65
      %s80 = sphi 0, %s66
      %s86 = sphi 0, %s88
      %s89 = sphi 0, %s86
      %s90 = sphi 0, %s89
      %s106 = sphi 0, %s90
    $region4: #{tpu_custom_call.1} parent=1 // loop_header_branch
      %18 = sbr.rel (%p16) target = $region8
    $region5: #{tpu_custom_call.1} parent=1 // loop_body
      %s20 = ssub.s32 %s15, 1
      %s21 = ssub.s32 %s15, 2
      %s28 = sadd.s32 1, %s23
      %p29 = scmp.ge.s32.totalorder %s28, 4
      %s30 = scalar_select %p29, 0, %s28
      %s31 = sadd.s32 1, %s22
      %s32 = scalar_select %p29, %s31, %s22
      %p33 = scmp.ge.s32.totalorder %s32, 2
      %s34 = scalar_select %p33, 0, %s32
      %s35 = ssub.s32 %s22, %s34
      %s36 = ssub.s32 %s23, %s30
      %s37 = sor.u32 %s35, %s36
      %p38 = scmp.eq.s32.totalorder %s37, 0
      %s40 = sadd.s32 %s39, 1
      %s41 = scalar_select %p38, %s39, %s40
      %p44 = pneg %p38
      %p45 = scmp.eq.s32.totalorder %s15, 7
      %p46 = por %p44, %p45
      %p47 = scmp.ne.s32.totalorder %s39, %s42
      %p48 = scmp.eq.s32.totalorder %s15, 0
      %p49 = por %p47, %p48
      %p50 = scmp.ne.s32.totalorder %s39, %s42
      %p51 = scmp.eq.s32.totalorder %s20, 7
      %p52 = por %p50, %p51
      %p53 = scmp.ne.s32.totalorder %s42, %s43
      %p54 = scmp.eq.s32.totalorder %s20, 0
      %p55 = por %p53, %p54
      %p56 = scmp.ne.s32.totalorder %s42, %s43
      %p57 = scmp.eq.s32.totalorder %s21, 7
      %p58 = por %p56, %p57
      %p60 = scmp.ne.s32.totalorder %s43, %s59
      %p61 = scmp.eq.s32.totalorder %s21, 0
      %p62 = por %p60, %p61
      %s64 = sadd.s32 %s63, 1
      %p67 = scmp.eq.s32.totalorder %s15, 7
      %p68 = scmp.ne.s32.totalorder %s63, %s65
      %p69 = scmp.eq.s32.totalorder %s15, 0
      %p70 = por %p68, %p69
      %p71 = scmp.ne.s32.totalorder %s63, %s65
      %p72 = scmp.eq.s32.totalorder %s20, 7
      %p73 = por %p71, %p72
      %p74 = scmp.ne.s32.totalorder %s65, %s66
      %p75 = scmp.eq.s32.totalorder %s20, 0
      %p76 = por %p74, %p75
      %p77 = scmp.ne.s32.totalorder %s65, %s66
      %p78 = scmp.eq.s32.totalorder %s21, 7
      %p79 = por %p77, %p78
      %p81 = scmp.ne.s32.totalorder %s66, %s80
      %p82 = scmp.eq.s32.totalorder %s21, 0
      %p83 = por %p81, %p82
      %s84 = ssub.s32 %s22, %s34
      %p85 = scmp.eq.s32.totalorder %s84, 0
      %s87 = sadd.s32 %s86, 1
      %s88 = scalar_select %p85, %s86, %s87
      %p91 = pneg %p85
      %p92 = scmp.eq.s32.totalorder %s15, 7
      %p93 = por %p91, %p92
      %p94 = scmp.ne.s32.totalorder %s86, %s89
      %p95 = scmp.eq.s32.totalorder %s15, 0
      %p96 = por %p94, %p95
      %p97 = scmp.ne.s32.totalorder %s86, %s89
      %p98 = scmp.eq.s32.totalorder %s20, 7
      %p99 = por %p97, %p98
      %p100 = scmp.ne.s32.totalorder %s89, %s90
      %p101 = scmp.eq.s32.totalorder %s20, 0
      %p102 = por %p100, %p101
      %p103 = scmp.ne.s32.totalorder %s89, %s90
      %p104 = scmp.eq.s32.totalorder %s21, 7
      %p105 = por %p103, %p104
      %p107 = scmp.ne.s32.totalorder %s90, %s106
      %p108 = scmp.eq.s32.totalorder %s21, 0
      %p109 = por %p107, %p108
      %p110 = scmp.le.s32.totalorder 1, %s15
      %p111 = scmp.lt.s32.totalorder %s15, 9
      %p112 = pnand %p110, %p111
      %p113 = pneg %p112
      // Predicated region
      $region9: #{tpu_custom_call.1} parent=5 // pred_check
        _
      $region10: #{tpu_custom_call.1} parent=5 // pred_check_branch
        %115 = sbr.rel (%p112) target = $region12
      $region11: #{tpu_custom_call.1} parent=5 // pred_region
        %s116 = ssub.s32 %s15, 1
        // Predicated region
        $region13: #{tpu_custom_call.1} parent=11 // pred_check
          %p117 = pneg %p76
        $region14: #{tpu_custom_call.1} parent=11 // pred_check_branch
          %119 = sbr.rel (%p117) target = $region16
        $region15: #{tpu_custom_call.1} parent=11 // pred_region
          %121 = vsyncadd [#allocation8], 0
          %s122 = sshll.u32 %s1, 4
          %s123 = int_to_ptr.hbm [resolvable:$true] %s122
          %s124 = sshll.u32 [#allocation7], 4
          %s125 = int_to_ptr.vmem [resolvable:$true] %s124
          %130 = dma.hbm_to_vmem [thread:$0]  %s123, 16384, %s125, [#allocation8], 256, 256, 16
        $region16: #{tpu_custom_call.1} parent=11 // pred_fallthru
          _
      $region12: #{tpu_custom_call.1} parent=5 // pred_fallthru
        _
      %p131 = scmp.lt.s32.totalorder %s15, 8
      // Predicated region
      $region17: #{tpu_custom_call.1} parent=5 // pred_check
        %p132 = pneg %p131
      $region18: #{tpu_custom_call.1} parent=5 // pred_check_branch
        %134 = sbr.rel (%p132) target = $region20
      $region19: #{tpu_custom_call.1} parent=5 // pred_region
        // Predicated region
        $region21: #{tpu_custom_call.1} parent=19 // pred_check
          %p135 = pneg %p49
        $region22: #{tpu_custom_call.1} parent=19 // pred_check_branch
          %137 = sbr.rel (%p135) target = $region24
        $region23: #{tpu_custom_call.1} parent=19 // pred_region
          %s138 = sand.u32 %s39, 1
          %s139 = scalar_lea.sflag [#allocation5], %s138
          %s140 = sand.u32 %s39, 1
          %s141 = smul.addr %s140, 16
          %s142 = scalar_lea.vmem [#allocation4], %s141
          %144 = vsyncadd %s139, 0
          %s145 = smul.addr %s23, 2
          %s146 = smul.addr %s22, 8
          %s147 = sadd.s32 %s145, %s146
          %s148 = smul.addr %s147, 8
          %s149 = scalar_lea.hbm %s0, %s148
          %s151 = sshll.u32 %s149, 4
          %s152 = int_to_ptr.hbm [resolvable:$true] %s151
          %s153 = sshll.u32 %s142, 4
          %s154 = int_to_ptr.vmem [resolvable:$true] %s153
          %156 = dma.hbm_to_vmem [thread:$0]  %s152, 256, %s154, %s139
        $region24: #{tpu_custom_call.1} parent=19 // pred_fallthru
          _
      $region20: #{tpu_custom_call.1} parent=5 // pred_fallthru
        _
      %p157 = scmp.le.s32.totalorder 1, %s15
      %p158 = scmp.lt.s32.totalorder %s15, 9
      %p159 = pnand %p157, %p158
      %p160 = pneg %p159
      // Predicated region
      $region25: #{tpu_custom_call.1} parent=5 // pred_check
        _
      $region26: #{tpu_custom_call.1} parent=5 // pred_check_branch
        %162 = sbr.rel (%p159) target = $region28
      $region27: #{tpu_custom_call.1} parent=5 // pred_region
        %s163 = ssub.s32 %s15, 1
        %s164 = sand.u32 %s42, 1
        %s165 = scalar_lea.sflag [#allocation5], %s164
        %s166 = sand.u32 %s42, 1
        %s167 = smul.addr %s166, 16
        %s168 = scalar_lea.vmem [#allocation4], %s167
        // Predicated region
        $region29: #{tpu_custom_call.1} parent=27 // pred_check
          %p169 = pneg %p55
        $region30: #{tpu_custom_call.1} parent=27 // pred_check_branch
          %171 = sbr.rel (%p169) target = $region32
        $region31: #{tpu_custom_call.1} parent=27 // pred_region
          %173 = dma.done %s165, 256
        $region32: #{tpu_custom_call.1} parent=27 // pred_fallthru
          _
        // Predicated region
        $region33: #{tpu_custom_call.1} parent=27 // pred_check
          %p174 = pneg %p76
        $region34: #{tpu_custom_call.1} parent=27 // pred_check_branch
          %176 = sbr.rel (%p174) target = $region36
        $region35: #{tpu_custom_call.1} parent=27 // pred_region
          %178 = dma.done [#allocation8], 16384
        $region36: #{tpu_custom_call.1} parent=27 // pred_fallthru
          _
        %s179 = sand.u32 %s42, 1
        %s180 = scalar_lea.sflag [#allocation5], %s179
        %s181 = sand.u32 %s42, 1
        %s182 = smul.addr %s181, 16
        %s183 = scalar_lea.vmem [#allocation4], %s182
        %p184 = pneg %p55
        %p185 = pneg %p52
        %p186 = pneg %p76
        %p187 = pneg %p73
        %p188 = pneg %p102
        %p189 = pneg %p99
        %s190 = sand.u32 %s89, 1
        %s191 = scalar_lea.sflag [#allocation6], %s190
        %s192 = sand.u32 %s89, 1
        %s193 = smul.addr %s192, 2
        %s194 = scalar_lea.vmem [#allocation9], %s193
        %v195 = vld [vmem:[%s168] sm:$0xff]
        %v196 = vld [vmem:[%s168 + $0x8] sm:$0xff]
        %v197 = vrot.slane %v195, 4
        %v198 = vadd.f32 %v195, %v197
        %v199 = vrot.slane %v198, 2
        %v200 = vadd.f32 %v198, %v199
        %v201 = vrot.slane %v200, 1
        %v202 = vadd.f32 %v200, %v201
        %v203 = vrot.slane %v196, 4
        %v204 = vadd.f32 %v196, %v203
        %v205 = vrot.slane %v204, 2
        %v206 = vadd.f32 %v204, %v205
        %v207 = vrot.slane %v206, 1
        %v208 = vadd.f32 %v206, %v207
        %v209 = vrot.slane %v195, 4
        %v210 = vmax.f32 %v195, %v209
        %v211 = vrot.slane %v210, 2
        %v212 = vmax.f32 %v210, %v211
        %v213 = vrot.slane %v212, 1
        %v214 = vmax.f32 %v212, %v213
        %v215 = vrot.slane %v196, 4
        %v216 = vmax.f32 %v196, %v215
        %v217 = vrot.slane %v216, 2
        %v218 = vmax.f32 %v216, %v217
        %v219 = vrot.slane %v218, 1
        %v220 = vmax.f32 %v218, %v219
        %p221 = scmp.eq.s32.totalorder %s25, 0
        // Predicated region
        $region37: #{tpu_custom_call.1} parent=27 // pred_check
          %p222 = pneg %p221
        $region38: #{tpu_custom_call.1} parent=27 // pred_check_branch
          %224 = sbr.rel (%p222) target = $region40
        $region39: #{tpu_custom_call.1} parent=27 // pred_region
          %v227 = vrot.slane %v208, 7
          %vm228 = vcmask 1040384
          %v229 = vsel %vm228, %v202, %v227
          %v231 = vlaneseq
          %vm232 = vcmp.ge.s32.totalorder %v231, 0
          %vm233 = vcmp.lt.s32.totalorder %v231, 256
          %vm234 = vmand %vm232, %vm233
          %235 = vst.msk [vmem:[#allocation2] sm:$0x3] %vm234, %v229
          %v238 = vrot.slane %v220, 7
          %v239 = vsel %vm228, %v214, %v238
          %241 = vst.msk [vmem:[#allocation3] sm:$0x3] %vm234, %v239
        $region40: #{tpu_custom_call.1} parent=27 // pred_fallthru
          _
        %p242 = scmp.gt.s32.totalorder %s25, 0
        // Predicated region
        $region41: #{tpu_custom_call.1} parent=27 // pred_check
          %p243 = pneg %p242
        $region42: #{tpu_custom_call.1} parent=27 // pred_check_branch
          %245 = sbr.rel (%p243) target = $region44
        $region43: #{tpu_custom_call.1} parent=27 // pred_region
          %v246 = vld [vmem:[#allocation2] sm:$0x3]
          %v249 = vrot.slane %v208, 7
          %vm250 = vcmask 1040384
          %v251 = vsel %vm250, %v202, %v249
          %v253 = vadd.f32 %v246, %v251
          %v254 = vlaneseq
          %vm255 = vcmp.ge.s32.totalorder %v254, 0
          %vm256 = vcmp.lt.s32.totalorder %v254, 256
          %vm257 = vmand %vm255, %vm256
          %258 = vst.msk [vmem:[#allocation2] sm:$0x3] %vm257, %v253
          %v259 = vld [vmem:[#allocation3] sm:$0x3]
          %v262 = vrot.slane %v220, 7
          %v263 = vsel %vm250, %v214, %v262
          %v265 = vmax.f32 %v259, %v263
          %266 = vst.msk [vmem:[#allocation3] sm:$0x3] %vm257, %v265
        $region44: #{tpu_custom_call.1} parent=27 // pred_fallthru
          _
        %p267 = scmp.eq.s32.totalorder %s25, 3
        // Predicated region
        $region45: #{tpu_custom_call.1} parent=27 // pred_check
          %p268 = pneg %p267
        $region46: #{tpu_custom_call.1} parent=27 // pred_check_branch
          %270 = sbr.rel (%p268) target = $region48
        $region47: #{tpu_custom_call.1} parent=27 // pred_region
          %v271 = vld [vmem:[#allocation2] sm:$0x3]
          %v272 = vld [vmem:[#allocation7] sm:$0xff]
          %v273 = vld [vmem:[#allocation7 + $0x8] sm:$0xff]
          %v274 = vld [vmem:[#allocation7 + $0x10] sm:$0xff]
          %v275 = vld [vmem:[#allocation7 + $0x18] sm:$0xff]
          %v276 = vld [vmem:[#allocation7 + $0x20] sm:$0xff]
          %v277 = vld [vmem:[#allocation7 + $0x28] sm:$0xff]
          %v278 = vld [vmem:[#allocation7 + $0x30] sm:$0xff]
          %v279 = vld [vmem:[#allocation7 + $0x38] sm:$0xff]
          %v280 = vld [vmem:[#allocation7 + $0x40] sm:$0xff]
          %v281 = vld [vmem:[#allocation7 + $0x48] sm:$0xff]
          %v282 = vld [vmem:[#allocation7 + $0x50] sm:$0xff]
          %v283 = vld [vmem:[#allocation7 + $0x58] sm:$0xff]
          %v284 = vld [vmem:[#allocation7 + $0x60] sm:$0xff]
          %v285 = vld [vmem:[#allocation7 + $0x68] sm:$0xff]
          %v286 = vld [vmem:[#allocation7 + $0x70] sm:$0xff]
          %v287 = vld [vmem:[#allocation7 + $0x78] sm:$0xff]
          %v288 = vld [vmem:[#allocation7 + $0x80] sm:$0xff]
          %v289 = vld [vmem:[#allocation7 + $0x88] sm:$0xff]
          %v290 = vld [vmem:[#allocation7 + $0x90] sm:$0xff]
          %v291 = vld [vmem:[#allocation7 + $0x98] sm:$0xff]
          %v292 = vld [vmem:[#allocation7 + $0xa0] sm:$0xff]
          %v293 = vld [vmem:[#allocation7 + $0xa8] sm:$0xff]
          %v294 = vld [vmem:[#allocation7 + $0xb0] sm:$0xff]
          %v295 = vld [vmem:[#allocation7 + $0xb8] sm:$0xff]
          %v296 = vld [vmem:[#allocation7 + $0xc0] sm:$0xff]
          %v297 = vld [vmem:[#allocation7 + $0xc8] sm:$0xff]
          %v298 = vld [vmem:[#allocation7 + $0xd0] sm:$0xff]
          %v299 = vld [vmem:[#allocation7 + $0xd8] sm:$0xff]
          %v300 = vld [vmem:[#allocation7 + $0xe0] sm:$0xff]
          %v301 = vld [vmem:[#allocation7 + $0xe8] sm:$0xff]
          %v302 = vld [vmem:[#allocation7 + $0xf0] sm:$0xff]
          %v303 = vld [vmem:[#allocation7 + $0xf8] sm:$0xff]
          %v304 = vld [vmem:[#allocation7 + $0x100] sm:$0xff]
          %v305 = vld [vmem:[#allocation7 + $0x108] sm:$0xff]
          %v306 = vld [vmem:[#allocation7 + $0x110] sm:$0xff]
          %v307 = vld [vmem:[#allocation7 + $0x118] sm:$0xff]
          %v308 = vld [vmem:[#allocation7 + $0x120] sm:$0xff]
          %v309 = vld [vmem:[#allocation7 + $0x128] sm:$0xff]
          %v310 = vld [vmem:[#allocation7 + $0x130] sm:$0xff]
          %v311 = vld [vmem:[#allocation7 + $0x138] sm:$0xff]
          %v312 = vld [vmem:[#allocation7 + $0x140] sm:$0xff]
          %v313 = vld [vmem:[#allocation7 + $0x148] sm:$0xff]
          %v314 = vld [vmem:[#allocation7 + $0x150] sm:$0xff]
          %v315 = vld [vmem:[#allocation7 + $0x158] sm:$0xff]
          %v316 = vld [vmem:[#allocation7 + $0x160] sm:$0xff]
          %v317 = vld [vmem:[#allocation7 + $0x168] sm:$0xff]
          %v318 = vld [vmem:[#allocation7 + $0x170] sm:$0xff]
          %v319 = vld [vmem:[#allocation7 + $0x178] sm:$0xff]
          %v320 = vld [vmem:[#allocation7 + $0x180] sm:$0xff]
          %v321 = vld [vmem:[#allocation7 + $0x188] sm:$0xff]
          %v322 = vld [vmem:[#allocation7 + $0x190] sm:$0xff]
          %v323 = vld [vmem:[#allocation7 + $0x198] sm:$0xff]
          %v324 = vld [vmem:[#allocation7 + $0x1a0] sm:$0xff]
          %v325 = vld [vmem:[#allocation7 + $0x1a8] sm:$0xff]
          %v326 = vld [vmem:[#allocation7 + $0x1b0] sm:$0xff]
          %v327 = vld [vmem:[#allocation7 + $0x1b8] sm:$0xff]
          %v328 = vld [vmem:[#allocation7 + $0x1c0] sm:$0xff]
          %v329 = vld [vmem:[#allocation7 + $0x1c8] sm:$0xff]
          %v330 = vld [vmem:[#allocation7 + $0x1d0] sm:$0xff]
          %v331 = vld [vmem:[#allocation7 + $0x1d8] sm:$0xff]
          %v332 = vld [vmem:[#allocation7 + $0x1e0] sm:$0xff]
          %v333 = vld [vmem:[#allocation7 + $0x1e8] sm:$0xff]
          %v334 = vld [vmem:[#allocation7 + $0x1f0] sm:$0xff]
          %v335 = vld [vmem:[#allocation7 + $0x1f8] sm:$0xff]
          %v336 = vld [vmem:[#allocation3] sm:$0x3]
          %s337 = scalar_lea.vmem [#allocation7], 512
          %v338 = vld [vmem:[%s337] sm:$0xff]
          %v339 = vld [vmem:[%s337 + $0x8] sm:$0xff]
          %v340 = vld [vmem:[%s337 + $0x10] sm:$0xff]
          %v341 = vld [vmem:[%s337 + $0x18] sm:$0xff]
          %v342 = vld [vmem:[%s337 + $0x20] sm:$0xff]
          %v343 = vld [vmem:[%s337 + $0x28] sm:$0xff]
          %v344 = vld [vmem:[%s337 + $0x30] sm:$0xff]
          %v345 = vld [vmem:[%s337 + $0x38] sm:$0xff]
          %v346 = vld [vmem:[%s337 + $0x40] sm:$0xff]
          %v347 = vld [vmem:[%s337 + $0x48] sm:$0xff]
          %v348 = vld [vmem:[%s337 + $0x50] sm:$0xff]
          %v349 = vld [vmem:[%s337 + $0x58] sm:$0xff]
          %v350 = vld [vmem:[%s337 + $0x60] sm:$0xff]
          %v351 = vld [vmem:[%s337 + $0x68] sm:$0xff]
          %v352 = vld [vmem:[%s337 + $0x70] sm:$0xff]
          %v353 = vld [vmem:[%s337 + $0x78] sm:$0xff]
          %v354 = vld [vmem:[%s337 + $0x80] sm:$0xff]
          %v355 = vld [vmem:[%s337 + $0x88] sm:$0xff]
          %v356 = vld [vmem:[%s337 + $0x90] sm:$0xff]
          %v357 = vld [vmem:[%s337 + $0x98] sm:$0xff]
          %v358 = vld [vmem:[%s337 + $0xa0] sm:$0xff]
          %v359 = vld [vmem:[%s337 + $0xa8] sm:$0xff]
          %v360 = vld [vmem:[%s337 + $0xb0] sm:$0xff]
          %v361 = vld [vmem:[%s337 + $0xb8] sm:$0xff]
          %v362 = vld [vmem:[%s337 + $0xc0] sm:$0xff]
          %v363 = vld [vmem:[%s337 + $0xc8] sm:$0xff]
          %v364 = vld [vmem:[%s337 + $0xd0] sm:$0xff]
          %v365 = vld [vmem:[%s337 + $0xd8] sm:$0xff]
          %v366 = vld [vmem:[%s337 + $0xe0] sm:$0xff]
          %v367 = vld [vmem:[%s337 + $0xe8] sm:$0xff]
          %v368 = vld [vmem:[%s337 + $0xf0] sm:$0xff]
          %v369 = vld [vmem:[%s337 + $0xf8] sm:$0xff]
          %v370 = vld [vmem:[%s337 + $0x100] sm:$0xff]
          %v371 = vld [vmem:[%s337 + $0x108] sm:$0xff]
          %v372 = vld [vmem:[%s337 + $0x110] sm:$0xff]
          %v373 = vld [vmem:[%s337 + $0x118] sm:$0xff]
          %v374 = vld [vmem:[%s337 + $0x120] sm:$0xff]
          %v375 = vld [vmem:[%s337 + $0x128] sm:$0xff]
          %v376 = vld [vmem:[%s337 + $0x130] sm:$0xff]
          %v377 = vld [vmem:[%s337 + $0x138] sm:$0xff]
          %v378 = vld [vmem:[%s337 + $0x140] sm:$0xff]
          %v379 = vld [vmem:[%s337 + $0x148] sm:$0xff]
          %v380 = vld [vmem:[%s337 + $0x150] sm:$0xff]
          %v381 = vld [vmem:[%s337 + $0x158] sm:$0xff]
          %v382 = vld [vmem:[%s337 + $0x160] sm:$0xff]
          %v383 = vld [vmem:[%s337 + $0x168] sm:$0xff]
          %v384 = vld [vmem:[%s337 + $0x170] sm:$0xff]
          %v385 = vld [vmem:[%s337 + $0x178] sm:$0xff]
          %v386 = vld [vmem:[%s337 + $0x180] sm:$0xff]
          %v387 = vld [vmem:[%s337 + $0x188] sm:$0xff]
          %v388 = vld [vmem:[%s337 + $0x190] sm:$0xff]
          %v389 = vld [vmem:[%s337 + $0x198] sm:$0xff]
          %v390 = vld [vmem:[%s337 + $0x1a0] sm:$0xff]
          %v391 = vld [vmem:[%s337 + $0x1a8] sm:$0xff]
          %v392 = vld [vmem:[%s337 + $0x1b0] sm:$0xff]
          %v393 = vld [vmem:[%s337 + $0x1b8] sm:$0xff]
          %v394 = vld [vmem:[%s337 + $0x1c0] sm:$0xff]
          %v395 = vld [vmem:[%s337 + $0x1c8] sm:$0xff]
          %v396 = vld [vmem:[%s337 + $0x1d0] sm:$0xff]
          %v397 = vld [vmem:[%s337 + $0x1d8] sm:$0xff]
          %v398 = vld [vmem:[%s337 + $0x1e0] sm:$0xff]
          %v399 = vld [vmem:[%s337 + $0x1e8] sm:$0xff]
          %v400 = vld [vmem:[%s337 + $0x1f0] sm:$0xff]
          %v401 = vld [vmem:[%s337 + $0x1f8] sm:$0xff]
          %v403 = vperm.slane %v336, 0
          %v404 = vperm.slane %v336, 1
          %407 = vmatpush.msra.mxu0 %v368
          %408 = vmatpush.msra.mxu0 %v366
          %409 = vmatpush.msra.mxu0 %v364
          %410 = vmatpush.msra.mxu0 %v362
          %411 = vmatpush.msra.mxu0 %v360
          %412 = vmatpush.msra.mxu0 %v358
          %413 = vmatpush.msra.mxu0 %v356
          %414 = vmatpush.msra.mxu0 %v354
          %415 = vmatpush.msra.mxu0 %v352
          %416 = vmatpush.msra.mxu0 %v350
          %417 = vmatpush.msra.mxu0 %v348
          %418 = vmatpush.msra.mxu0 %v346
          %419 = vmatpush.msra.mxu0 %v344
          %420 = vmatpush.msra.mxu0 %v342
          %421 = vmatpush.msra.mxu0 %v340
          %422 = vmatpush.msra.mxu0 %v338
          %423 = vmatmul.f32.gmra.mxu0 %v403
          %v424 = vpop.f32.mrf.mxu0
          %v425 = vadd.f32 0.0, %v424
          %426 = vdwg.mxu0
          %427 = vmatpush.msra.mxu0 %v400
          %428 = vmatpush.msra.mxu0 %v398
          %429 = vmatpush.msra.mxu0 %v396
          %430 = vmatpush.msra.mxu0 %v394
          %431 = vmatpush.msra.mxu0 %v392
          %432 = vmatpush.msra.mxu0 %v390
          %433 = vmatpush.msra.mxu0 %v388
          %434 = vmatpush.msra.mxu0 %v386
          %435 = vmatpush.msra.mxu0 %v384
          %436 = vmatpush.msra.mxu0 %v382
          %437 = vmatpush.msra.mxu0 %v380
          %438 = vmatpush.msra.mxu0 %v378
          %439 = vmatpush.msra.mxu0 %v376
          %440 = vmatpush.msra.mxu0 %v374
          %441 = vmatpush.msra.mxu0 %v372
          %442 = vmatpush.msra.mxu0 %v370
          %443 = vmatmul.f32.gmra.mxu0 %v404
          %v444 = vpop.f32.mrf.mxu0
          %v445 = vadd.f32 %v425, %v444
          %446 = vdwg.mxu0
          %447 = vmatpush.msra.mxu0 %v369
          %448 = vmatpush.msra.mxu0 %v367
          %449 = vmatpush.msra.mxu0 %v365
          %450 = vmatpush.msra.mxu0 %v363
          %451 = vmatpush.msra.mxu0 %v361
          %452 = vmatpush.msra.mxu0 %v359
          %453 = vmatpush.msra.mxu0 %v357
          %454 = vmatpush.msra.mxu0 %v355
          %455 = vmatpush.msra.mxu0 %v353
          %456 = vmatpush.msra.mxu0 %v351
          %457 = vmatpush.msra.mxu0 %v349
          %458 = vmatpush.msra.mxu0 %v347
          %459 = vmatpush.msra.mxu0 %v345
          %460 = vmatpush.msra.mxu0 %v343
          %461 = vmatpush.msra.mxu0 %v341
          %462 = vmatpush.msra.mxu0 %v339
          %463 = vmatmul.f32.gmra.mxu0 %v403
          %v464 = vpop.f32.mrf.mxu0
          %v465 = vadd.f32 0.0, %v464
          %466 = vdwg.mxu0
          %467 = vmatpush.msra.mxu0 %v401
          %468 = vmatpush.msra.mxu0 %v399
          %469 = vmatpush.msra.mxu0 %v397
          %470 = vmatpush.msra.mxu0 %v395
          %471 = vmatpush.msra.mxu0 %v393
          %472 = vmatpush.msra.mxu0 %v391
          %473 = vmatpush.msra.mxu0 %v389
          %474 = vmatpush.msra.mxu0 %v387
          %475 = vmatpush.msra.mxu0 %v385
          %476 = vmatpush.msra.mxu0 %v383
          %477 = vmatpush.msra.mxu0 %v381
          %478 = vmatpush.msra.mxu0 %v379
          %479 = vmatpush.msra.mxu0 %v377
          %480 = vmatpush.msra.mxu0 %v375
          %481 = vmatpush.msra.mxu0 %v373
          %482 = vmatpush.msra.mxu0 %v371
          %483 = vmatmul.f32.gmra.mxu0 %v404
          %v484 = vpop.f32.mrf.mxu0
          %v485 = vadd.f32 %v465, %v484
          %486 = vdwg.mxu0
          %v488 = vperm.slane %v271, 0
          %v489 = vperm.slane %v271, 1
          %492 = vmatpush.msra.mxu0 %v302
          %493 = vmatpush.msra.mxu0 %v300
          %494 = vmatpush.msra.mxu0 %v298
          %495 = vmatpush.msra.mxu0 %v296
          %496 = vmatpush.msra.mxu0 %v294
          %497 = vmatpush.msra.mxu0 %v292
          %498 = vmatpush.msra.mxu0 %v290
          %499 = vmatpush.msra.mxu0 %v288
          %500 = vmatpush.msra.mxu0 %v286
          %501 = vmatpush.msra.mxu0 %v284
          %502 = vmatpush.msra.mxu0 %v282
          %503 = vmatpush.msra.mxu0 %v280
          %504 = vmatpush.msra.mxu0 %v278
          %505 = vmatpush.msra.mxu0 %v276
          %506 = vmatpush.msra.mxu0 %v274
          %507 = vmatpush.msra.mxu0 %v272
          %508 = vmatmul.f32.gmra.mxu0 %v488
          %v509 = vpop.f32.mrf.mxu0
          %v510 = vadd.f32 %v445, %v509
          %511 = vdwg.mxu0
          %512 = vmatpush.msra.mxu0 %v334
          %513 = vmatpush.msra.mxu0 %v332
          %514 = vmatpush.msra.mxu0 %v330
          %515 = vmatpush.msra.mxu0 %v328
          %516 = vmatpush.msra.mxu0 %v326
          %517 = vmatpush.msra.mxu0 %v324
          %518 = vmatpush.msra.mxu0 %v322
          %519 = vmatpush.msra.mxu0 %v320
          %520 = vmatpush.msra.mxu0 %v318
          %521 = vmatpush.msra.mxu0 %v316
          %522 = vmatpush.msra.mxu0 %v314
          %523 = vmatpush.msra.mxu0 %v312
          %524 = vmatpush.msra.mxu0 %v310
          %525 = vmatpush.msra.mxu0 %v308
          %526 = vmatpush.msra.mxu0 %v306
          %527 = vmatpush.msra.mxu0 %v304
          %528 = vmatmul.f32.gmra.mxu0 %v489
          %v529 = vpop.f32.mrf.mxu0
          %v530 = vadd.f32 %v510, %v529
          %531 = vdwg.mxu0
          %532 = vmatpush.msra.mxu0 %v303
          %533 = vmatpush.msra.mxu0 %v301
          %534 = vmatpush.msra.mxu0 %v299
          %535 = vmatpush.msra.mxu0 %v297
          %536 = vmatpush.msra.mxu0 %v295
          %537 = vmatpush.msra.mxu0 %v293
          %538 = vmatpush.msra.mxu0 %v291
          %539 = vmatpush.msra.mxu0 %v289
          %540 = vmatpush.msra.mxu0 %v287
          %541 = vmatpush.msra.mxu0 %v285
          %542 = vmatpush.msra.mxu0 %v283
          %543 = vmatpush.msra.mxu0 %v281
          %544 = vmatpush.msra.mxu0 %v279
          %545 = vmatpush.msra.mxu0 %v277
          %546 = vmatpush.msra.mxu0 %v275
          %547 = vmatpush.msra.mxu0 %v273
          %548 = vmatmul.f32.gmra.mxu0 %v488
          %v549 = vpop.f32.mrf.mxu0
          %v550 = vadd.f32 %v485, %v549
          %551 = vdwg.mxu0
          %552 = vmatpush.msra.mxu0 %v335
          %553 = vmatpush.msra.mxu0 %v333
          %554 = vmatpush.msra.mxu0 %v331
          %555 = vmatpush.msra.mxu0 %v329
          %556 = vmatpush.msra.mxu0 %v327
          %557 = vmatpush.msra.mxu0 %v325
          %558 = vmatpush.msra.mxu0 %v323
          %559 = vmatpush.msra.mxu0 %v321
          %560 = vmatpush.msra.mxu0 %v319
          %561 = vmatpush.msra.mxu0 %v317
          %562 = vmatpush.msra.mxu0 %v315
          %563 = vmatpush.msra.mxu0 %v313
          %564 = vmatpush.msra.mxu0 %v311
          %565 = vmatpush.msra.mxu0 %v309
          %566 = vmatpush.msra.mxu0 %v307
          %567 = vmatpush.msra.mxu0 %v305
          %568 = vmatmul.f32.gmra.mxu0 %v489
          %v569 = vpop.f32.mrf.mxu0
          %v570 = vadd.f32 %v550, %v569
          %571 = vdwg.mxu0
          %v572 = vxor.u32 %v530, 2147483648
          %v573 = vxor.u32 %v570, 2147483648
          %v574 = vmul.f32 %v572, 1.442695
          %v575 = vpow.pop %v574
          %v576 = vmul.f32 %v573, 1.442695
          %v577 = vpow.pop %v576
          %v578 = vadd.f32 %v575, 1.0
          %v579 = vadd.f32 %v577, 1.0
          %v580 = vrcp.pop %v578
          %v581 = vmul.f32 %v578, %v580
          %v582 = vsub.f32 1.0, %v581
          %v583 = vmul.f32 %v580, %v582
          %v584 = vadd.f32 %v580, %v583
          %vm585 = vweird.f32 %v578
          %vm586 = vweird.f32 %v580
          %vm587 = vmor %vm585, %vm586
          %v588 = vsel %vm587, %v580, %v584
          %v589 = vand.u32 2147483647, %v578
          %vm590 = vcmp.eq.f32.partialorder %v589, 8.507059e+37
          %v591 = vand.u32 %v578, 2147483648
          %v592 = vor.u32 1.1754944e-38, %v591
          %v593 = vsel %vm590, %v592, %v588
          %v594 = vmul.f32 1.0, %v593
          %v595 = vrcp.pop %v579
          %v596 = vmul.f32 %v579, %v595
          %v597 = vsub.f32 1.0, %v596
          %v598 = vmul.f32 %v595, %v597
          %v599 = vadd.f32 %v595, %v598
          %vm600 = vweird.f32 %v579
          %vm601 = vweird.f32 %v595
          %vm602 = vmor %vm600, %vm601
          %v603 = vsel %vm602, %v595, %v599
          %v604 = vand.u32 2147483647, %v579
          %vm605 = vcmp.eq.f32.partialorder %v604, 8.507059e+37
          %v606 = vand.u32 %v579, 2147483648
          %v607 = vor.u32 1.1754944e-38, %v606
          %v608 = vsel %vm605, %v607, %v603
          %v609 = vmul.f32 1.0, %v608
          %v612 = vrot.slane %v609, 7
          %vm613 = vcmask 1040384
          %v614 = vsel %vm613, %v594, %v612
          %v616 = vlaneseq
          %vm617 = vcmp.ge.s32.totalorder %v616, 0
          %vm618 = vcmp.lt.s32.totalorder %v616, 256
          %vm619 = vmand %vm617, %vm618
          %620 = vst.msk [vmem:[%s194] sm:$0x3] %vm619, %v614
        $region48: #{tpu_custom_call.1} parent=27 // pred_fallthru
          _
        %s621 = sand.u32 %s89, 1
        %s622 = scalar_lea.sflag [#allocation6], %s621
        %s623 = sand.u32 %s89, 1
        %s624 = smul.addr %s623, 2
        %s625 = scalar_lea.vmem [#allocation9], %s624
        // Predicated region
        $region49: #{tpu_custom_call.1} parent=27 // pred_check
          %p626 = pneg %p99
        $region50: #{tpu_custom_call.1} parent=27 // pred_check_branch
          %628 = sbr.rel (%p626) target = $region52
        $region51: #{tpu_custom_call.1} parent=27 // pred_region
          %630 = vsyncadd %s622, 0
          %s631 = smul.addr %s24, 2
          %s632 = scalar_lea.hbm %s2, %s631
          %s634 = sshll.u32 %s625, 4
          %s635 = int_to_ptr.vmem [resolvable:$true] %s634
          %s636 = sshll.u32 %s632, 4
          %s637 = int_to_ptr.hbm [resolvable:$true] %s636
          %639 = dma.vmem_to_hbm [thread:$0]  %s635, 32, %s637, %s622
        $region52: #{tpu_custom_call.1} parent=27 // pred_fallthru
          _
      $region28: #{tpu_custom_call.1} parent=5 // pred_fallthru
        _
      %p640 = scmp.le.s32.totalorder 2, %s15
      // Predicated region
      $region53: #{tpu_custom_call.1} parent=5 // pred_check
        %p641 = pneg %p640
      $region54: #{tpu_custom_call.1} parent=5 // pred_check_branch
        %643 = sbr.rel (%p641) target = $region56
      $region55: #{tpu_custom_call.1} parent=5 // pred_region
        %s644 = ssub.s32 %s15, 2
        // Predicated region
        $region57: #{tpu_custom_call.1} parent=55 // pred_check
          %p645 = pneg %p105
        $region58: #{tpu_custom_call.1} parent=55 // pred_check_branch
          %647 = sbr.rel (%p645) target = $region60
        $region59: #{tpu_custom_call.1} parent=55 // pred_region
          %s648 = sand.u32 %s90, 1
          %s649 = scalar_lea.sflag [#allocation6], %s648
          %s650 = sand.u32 %s90, 1
          %s651 = smul.addr %s650, 2
          %s652 = scalar_lea.vmem [#allocation9], %s651
          %654 = dma.done %s649, 32
        $region60: #{tpu_custom_call.1} parent=55 // pred_fallthru
          _
      $region56: #{tpu_custom_call.1} parent=5 // pred_fallthru
        _
    $region6: #{tpu_custom_call.1} parent=1 // loop_footer
      %s19 = sadd.s32 1, %s15
    $region7: #{tpu_custom_call.1} parent=1 // loop_footer_branch
      %14 = sbr.rel target = $region3
    $region8: #{tpu_custom_call.1} parent=1 // loop_exit
      _
    %655 = vsyncpa [#allocation5], 1
    %s656 = scalar_lea.sflag [#allocation5], 1
    %657 = vsyncpa %s656, 1
    %658 = vsyncpa [#allocation8], 1
    %659 = vsyncpa [#allocation6], 1
    %s660 = scalar_lea.sflag [#allocation6], 1
    %661 = vsyncpa %s660, 1

</llo_original>
